<compile_context>
chip_gen: v7x
topology: tpu7x:2x2x1
jax: 0.10.0
libtpu: 0.0.40
codegen_flags: <defaults>
</compile_context>

<pallas_src>
import jax
import jax.numpy as jnp
from jax.experimental import pallas as pl
from jax.experimental.pallas import tpu as pltpu


def _round_up(x: int, m: int) -> int:
    return (x + m - 1) // m * m


def _additive_classifier_kernel(feat_ref, attn_ref, w1_ref, b1_ref,
                                w2t_ref, b2t_ref, starts_ref, ends_ref,
                                plt_ref, logits_ref):
    i = pl.program_id(0)
    tile = feat_ref.shape[0]
    num_bags = starts_ref.shape[0]

    # attended_features = attention * features   ((tile,1) lane-broadcast)
    attended = attn_ref[...] * feat_ref[...]

    # hidden layer: Linear + ReLU   -> (tile, H)
    h = jnp.dot(attended, w1_ref[...], preferred_element_type=jnp.float32)
    h = jnp.maximum(h + b1_ref[...], 0.0)

    # output layer, produced transposed for lane-dense stores:
    #   (out, tile) = w2t(out,H) . h(tile,H)^T   (contract H)
    plt = jax.lax.dot_general(
        w2t_ref[...], h, (((1,), (1,)), ((), ())),
        preferred_element_type=jnp.float32)
    plt = plt + b2t_ref[...]                     # (out,1) lane-broadcast
    plt_ref[...] = plt.astype(plt_ref.dtype)

    # Bag membership mask rebuilt in-kernel from bag boundaries.
    # Global patch index for this tile; padded patches (idx >= total) fall
    # outside every [start, end) interval and are excluded automatically.
    idx = i * tile + jax.lax.broadcasted_iota(jnp.int32, (num_bags, tile), 1)
    member = jnp.logical_and(idx >= starts_ref[...],
                             idx < ends_ref[...]).astype(jnp.float32)

    # Per-tile partial bag sums: (bags, out) = member(bags,tile) . plt(out,tile)^T
    partial = jax.lax.dot_general(
        member, plt, (((1,), (1,)), ((), ())),
        preferred_element_type=jnp.float32)
    logits_ref[...] = partial.astype(logits_ref.dtype)


def additive_classifier_forward(features, attention, bag_sizes, params,
                                *, max_tile: int = 2048):
    """Full forward pass; returns dict with 'logits' and 'patch_logits'."""
    assert max_tile % 128 == 0
    n_patches, d_in = features.shape
    num_bags = int(bag_sizes.shape[0])
    w1, b1, w2, b2 = params           # w1:(in,H) b1:(1,H) w2:(H,out) b2:(1,out)
    h_dim = w1.shape[1]
    out_dims = w2.shape[1]

    # Tiny transposed copies of the output layer (torch-style (out,in) layout).
    w2t = w2.T                        # (out, H)
    b2t = b2.T                        # (out, 1)

    # Bag boundaries only (2 * num_bags int32) -- no (bags, N) one-hot in HBM.
    bag_sizes_i32 = bag_sizes.astype(jnp.int32)
    ends = jnp.cumsum(bag_sizes_i32)
    starts = (ends - bag_sizes_i32).reshape(num_bags, 1)
    ends = ends.reshape(num_bags, 1)

    # Tile selection: always a multiple of 128 so the transposed patch-logit
    # stores are lane-dense on every path; largest tile that does not exceed
    # max_tile (per-step overhead amortization).
    tile = min(max_tile, _round_up(n_patches, 128))
    n_pad = _round_up(n_patches, tile)
    grid = n_pad // tile

    if n_pad != n_patches:
        pad = n_pad - n_patches
        features = jnp.pad(features, ((0, pad), (0, 0)))
        attention = jnp.pad(attention, ((0, pad), (0, 0)))

    plt_t, logits_partial = pl.pallas_call(
        _additive_classifier_kernel,
        grid=(grid,),
        in_specs=[
            # streamed patch tiles (double-buffered by the pipeline)
            pl.BlockSpec((tile, d_in), lambda i: (i, 0)),
            pl.BlockSpec((tile, 1), lambda i: (i, 0)),
            # weights / biases / bag boundaries: constant block -> VMEM-resident
            pl.BlockSpec((d_in, h_dim), lambda i: (0, 0)),
            pl.BlockSpec((1, h_dim), lambda i: (0, 0)),
            pl.BlockSpec((out_dims, h_dim), lambda i: (0, 0)),
            pl.BlockSpec((out_dims, 1), lambda i: (0, 0)),
            pl.BlockSpec((num_bags, 1), lambda i: (0, 0)),
            pl.BlockSpec((num_bags, 1), lambda i: (0, 0)),
        ],
        out_specs=(
            # lane-dense transposed patch logits: (out_dims, N_pad)
            pl.BlockSpec((out_dims, tile), lambda i: (0, i)),
            # per-tile partial bag logits: (grid, num_bags, out_dims)
            pl.BlockSpec((None, num_bags, out_dims), lambda i: (i, 0, 0)),
        ),
        out_shape=(
            jax.ShapeDtypeStruct((out_dims, n_pad), jnp.float32),
            jax.ShapeDtypeStruct((grid, num_bags, out_dims), jnp.float32),
        ),
        compiler_params=pltpu.CompilerParams(
            dimension_semantics=("parallel",),   # megacore-shardable on v7x
        ),
    )(features, attention, w1, b1, w2t, b2t, starts, ends)

    patch_logits = plt_t[:, :n_patches].T          # back to (N, out_dims)
    logits = logits_partial.sum(axis=0)            # reduce per-tile partials
    return {"logits": logits, "patch_logits": patch_logits}


def init_params(key, input_dims, hidden_dims, output_dims):
    """Deterministic init matching torch.nn.Linear shapes (stored as (in,out))."""
    k1, k2, k3, k4 = jax.random.split(key, 4)
    (h,) = hidden_dims
    w1 = jax.random.normal(k1, (input_dims, h), jnp.float32) * 0.1
    b1 = jax.random.normal(k2, (1, h), jnp.float32) * 0.01
    w2 = jax.random.normal(k3, (h, output_dims), jnp.float32) * 0.1
    b2 = jax.random.normal(k4, (1, output_dims), jnp.float32) * 0.01
    return w1, b1, w2, b2


def _reference(features, attention, bag_sizes, params):
    w1, b1, w2, b2 = params
    attended = attention * features
    h = jnp.maximum(attended @ w1 + b1, 0.0)
    patch_logits = h @ w2 + b2
    ends = jnp.cumsum(bag_sizes)
    starts = ends - bag_sizes
    idx = jnp.arange(features.shape[0])
    onehot = ((idx[None, :] >= starts[:, None]) &
              (idx[None, :] < ends[:, None])).astype(jnp.float32)
    return onehot @ patch_logits, patch_logits


def _check(n_patches, bag_sizes, params, input_dims, seed, max_tile=2048):
    key = jax.random.PRNGKey(seed)
    kf, ka = jax.random.split(key, 2)
    features = jax.random.normal(kf, (n_patches, input_dims), jnp.float32)
    attention = jax.nn.softmax(
        jax.random.normal(ka, (n_patches, 1), jnp.float32), axis=0)

    out = additive_classifier_forward(features, attention, bag_sizes, params,
                                      max_tile=max_tile)
    jax.block_until_ready(out)

    ref_logits, ref_patch_logits = _reference(features, attention, bag_sizes,
                                              params)
    assert out["patch_logits"].shape == ref_patch_logits.shape
    assert out["logits"].shape == ref_logits.shape
    assert jnp.allclose(out["patch_logits"], ref_patch_logits,
                        atol=1e-4, rtol=1e-3)
    assert jnp.allclose(out["logits"], ref_logits, atol=1e-3, rtol=1e-3)


if __name__ == "__main__":
    input_dims = 16
    hidden_dims = (32,)
    output_dims = 4

    params = init_params(jax.random.PRNGKey(0), input_dims, hidden_dims,
                         output_dims)

    # Small, module-consistent shapes (single 128-row tile, tail padding).
    _check(n_patches=16,
           bag_sizes=jnp.array([6, 10], dtype=jnp.int32),
           params=params, input_dims=input_dims, seed=1)

    # Multi-tile path: exercises the pipelined grid, tail padding, and bags
    # spanning tile boundaries (tile=512, 3 grid steps).
    _check(n_patches=1200,
           bag_sizes=jnp.array([300, 500, 400], dtype=jnp.int32),
           params=params, input_dims=input_dims, seed=2, max_tile=512)

    # Same data through the large single-tile (default max_tile=2048) path.
    _check(n_patches=1200,
           bag_sizes=jnp.array([300, 500, 400], dtype=jnp.int32),
           params=params, input_dims=input_dims, seed=2)

    print("KERNEL_OK")
</pallas_src>

<mosaic_0001>
module attributes {stable_mosaic.version = 11 : i64} {
  func.func @_additive_classifier_kernel(%arg0: i32, %arg1: memref<128x16xf32, #tpu.memory_space<vmem>>, %arg2: memref<128x1xf32, #tpu.memory_space<vmem>>, %arg3: memref<16x32xf32, #tpu.memory_space<vmem>>, %arg4: memref<1x32xf32, #tpu.memory_space<vmem>>, %arg5: memref<4x32xf32, #tpu.memory_space<vmem>>, %arg6: memref<4x1xf32, #tpu.memory_space<vmem>>, %arg7: memref<2x1xi32, #tpu.memory_space<vmem>>, %arg8: memref<2x1xi32, #tpu.memory_space<vmem>>, %arg9: memref<4x128xf32, #tpu.memory_space<vmem>>, %arg10: memref<1x2x4xf32, #tpu.memory_space<vmem>>) attributes {dimension_semantics = [#tpu.dimension_semantics<parallel>], iteration_bounds = array<i64: 1>, scalar_prefetch = 0 : i64, scratch_operands = 0 : i64, tpu.core_type = #tpu.core_type<tc>, window_params = [{transform_indices = @transform_0, window_bounds = array<i64: 128, 16>}, {transform_indices = @transform_1, window_bounds = array<i64: 128, 1>}, {pipeline_mode = #tpu.pipeline_mode<synchronous>, transform_indices = @transform_2, window_bounds = array<i64: 16, 32>}, {pipeline_mode = #tpu.pipeline_mode<synchronous>, transform_indices = @transform_3, window_bounds = array<i64: 1, 32>}, {pipeline_mode = #tpu.pipeline_mode<synchronous>, transform_indices = @transform_4, window_bounds = array<i64: 4, 32>}, {pipeline_mode = #tpu.pipeline_mode<synchronous>, transform_indices = @transform_5, window_bounds = array<i64: 4, 1>}, {pipeline_mode = #tpu.pipeline_mode<synchronous>, transform_indices = @transform_6, window_bounds = array<i64: 2, 1>}, {pipeline_mode = #tpu.pipeline_mode<synchronous>, transform_indices = @transform_7, window_bounds = array<i64: 2, 1>}, {transform_indices = @transform_8, window_bounds = array<i64: 4, 128>}, {transform_indices = @transform_9, window_bounds = array<i64: 1, 2, 4>}]} {
    %c0 = arith.constant 0 : index
    %c0_0 = arith.constant 0 : index
    %0 = vector.load %arg2[%c0, %c0_0] : memref<128x1xf32, #tpu.memory_space<vmem>>, vector<128x1xf32>
    %c0_1 = arith.constant 0 : index
    %c0_2 = arith.constant 0 : index
    %1 = vector.load %arg1[%c0_1, %c0_2] : memref<128x16xf32, #tpu.memory_space<vmem>>, vector<128x16xf32>
    %2 = vector.broadcast %0 : vector<128x1xf32> to vector<128x16xf32>
    %3 = arith.mulf %2, %1 : vector<128x16xf32>
    %c0_3 = arith.constant 0 : index
    %c0_4 = arith.constant 0 : index
    %4 = vector.load %arg3[%c0_3, %c0_4] : memref<16x32xf32, #tpu.memory_space<vmem>>, vector<16x32xf32>
    %cst = arith.constant dense<0.000000e+00> : vector<128x32xf32>
    %5 = tpu.matmul %3, %4, %cst {dimension_numbers = #tpu.dot_dimension_numbers<[1], [0], [0], [1], [0, 0, 1, 1], [], []>} : vector<128x16xf32>, vector<16x32xf32>, vector<128x32xf32> -> vector<128x32xf32>
    %c0_5 = arith.constant 0 : index
    %c0_6 = arith.constant 0 : index
    %6 = vector.load %arg4[%c0_5, %c0_6] : memref<1x32xf32, #tpu.memory_space<vmem>>, vector<1x32xf32>
    %7 = vector.broadcast %6 : vector<1x32xf32> to vector<128x32xf32>
    %8 = arith.addf %5, %7 : vector<128x32xf32>
    %cst_7 = arith.constant 0.000000e+00 : f32
    %9 = vector.broadcast %cst_7 : f32 to vector<128x32xf32>
    %10 = arith.maximumf %8, %9 : vector<128x32xf32>
    %c0_8 = arith.constant 0 : index
    %c0_9 = arith.constant 0 : index
    %11 = vector.load %arg5[%c0_8, %c0_9] : memref<4x32xf32, #tpu.memory_space<vmem>>, vector<4x32xf32>
    %cst_10 = arith.constant dense<0.000000e+00> : vector<4x128xf32>
    %12 = tpu.matmul %11, %10, %cst_10 {dimension_numbers = #tpu.dot_dimension_numbers<[1], [1], [0], [0], [0, 0, 1, 0], [], []>} : vector<4x32xf32>, vector<128x32xf32>, vector<4x128xf32> -> vector<4x128xf32>
    %c0_11 = arith.constant 0 : index
    %c0_12 = arith.constant 0 : index
    %13 = vector.load %arg6[%c0_11, %c0_12] : memref<4x1xf32, #tpu.memory_space<vmem>>, vector<4x1xf32>
    %14 = vector.broadcast %13 : vector<4x1xf32> to vector<4x128xf32>
    %15 = arith.addf %12, %14 : vector<4x128xf32>
    %c0_13 = arith.constant 0 : index
    %c0_14 = arith.constant 0 : index
    %16 = vector.load %arg9[%c0_13, %c0_14] : memref<4x128xf32, #tpu.memory_space<vmem>>, vector<4x128xf32>
    tpu.vector_store %arg9[%c0_13, %c0_14], %15 {strides = array<i32>} : memref<4x128xf32, #tpu.memory_space<vmem>>, vector<4x128xf32>,
    %c128_i32 = arith.constant 128 : i32
    %17 = arith.muli %arg0, %c128_i32 : i32
    %18 = tpu.iota {dimensions = array<i32: 1>} : vector<2x128xi32>
    %19 = vector.broadcast %17 : i32 to vector<2x128xi32>
    %20 = arith.addi %19, %18 : vector<2x128xi32>
    %c0_15 = arith.constant 0 : index
    %c0_16 = arith.constant 0 : index
    %21 = vector.load %arg7[%c0_15, %c0_16] : memref<2x1xi32, #tpu.memory_space<vmem>>, vector<2x1xi32>
    %22 = vector.broadcast %21 : vector<2x1xi32> to vector<2x128xi32>
    %23 = arith.cmpi sge, %20, %22 : vector<2x128xi32>
    %c0_17 = arith.constant 0 : index
    %c0_18 = arith.constant 0 : index
    %24 = vector.load %arg8[%c0_17, %c0_18] : memref<2x1xi32, #tpu.memory_space<vmem>>, vector<2x1xi32>
    %25 = vector.broadcast %24 : vector<2x1xi32> to vector<2x128xi32>
    %26 = arith.cmpi slt, %20, %25 : vector<2x128xi32>
    %27 = arith.andi %23, %26 : vector<2x128xi1>
    %28 = arith.extui %27 : vector<2x128xi1> to vector<2x128xi32>
    %29 = arith.sitofp %28 : vector<2x128xi32> to vector<2x128xf32>
    %cst_19 = arith.constant dense<0.000000e+00> : vector<2x4xf32>
    %30 = tpu.matmul %29, %15, %cst_19 {dimension_numbers = #tpu.dot_dimension_numbers<[1], [1], [0], [0], [0, 0, 1, 0], [], []>} : vector<2x128xf32>, vector<4x128xf32>, vector<2x4xf32> -> vector<2x4xf32>
    %c0_20 = arith.constant 0 : index
    %c0_21 = arith.constant 0 : index
    %c0_22 = arith.constant 0 : index
    %31 = vector.load %arg10[%c0_20, %c0_21, %c0_22] : memref<1x2x4xf32, #tpu.memory_space<vmem>>, vector<1x2x4xf32>
    %32 = vector.shape_cast %31 : vector<1x2x4xf32> to vector<2x4xf32>
    %33 = vector.shape_cast %30 : vector<2x4xf32> to vector<1x2x4xf32>
    tpu.vector_store %arg10[%c0_20, %c0_21, %c0_22], %33 {strides = array<i32>} : memref<1x2x4xf32, #tpu.memory_space<vmem>>, vector<1x2x4xf32>,
    return
  }
  func.func @transform_0(%arg0: i32) -> (i32, i32) {
    %c0_i32 = arith.constant 0 : i32
    %c0_i32_0 = arith.constant 0 : i32
    return %arg0, %c0_i32 : i32, i32
  }
  func.func @transform_1(%arg0: i32) -> (i32, i32) {
    %c0_i32 = arith.constant 0 : i32
    %c0_i32_0 = arith.constant 0 : i32
    return %arg0, %c0_i32 : i32, i32
  }
  func.func @transform_2(%arg0: i32) -> (i32, i32) {
    %c0_i32 = arith.constant 0 : i32
    %c0_i32_0 = arith.constant 0 : i32
    %c0_i32_1 = arith.constant 0 : i32
    return %c0_i32, %c0_i32_0 : i32, i32
  }
  func.func @transform_3(%arg0: i32) -> (i32, i32) {
    %c0_i32 = arith.constant 0 : i32
    %c0_i32_0 = arith.constant 0 : i32
    %c0_i32_1 = arith.constant 0 : i32
    return %c0_i32, %c0_i32_0 : i32, i32
  }
  func.func @transform_4(%arg0: i32) -> (i32, i32) {
    %c0_i32 = arith.constant 0 : i32
    %c0_i32_0 = arith.constant 0 : i32
    %c0_i32_1 = arith.constant 0 : i32
    return %c0_i32, %c0_i32_0 : i32, i32
  }
  func.func @transform_5(%arg0: i32) -> (i32, i32) {
    %c0_i32 = arith.constant 0 : i32
    %c0_i32_0 = arith.constant 0 : i32
    %c0_i32_1 = arith.constant 0 : i32
    return %c0_i32, %c0_i32_0 : i32, i32
  }
  func.func @transform_6(%arg0: i32) -> (i32, i32) {
    %c0_i32 = arith.constant 0 : i32
    %c0_i32_0 = arith.constant 0 : i32
    %c0_i32_1 = arith.constant 0 : i32
    return %c0_i32, %c0_i32_0 : i32, i32
  }
  func.func @transform_7(%arg0: i32) -> (i32, i32) {
    %c0_i32 = arith.constant 0 : i32
    %c0_i32_0 = arith.constant 0 : i32
    %c0_i32_1 = arith.constant 0 : i32
    return %c0_i32, %c0_i32_0 : i32, i32
  }
  func.func @transform_8(%arg0: i32) -> (i32, i32) {
    %c0_i32 = arith.constant 0 : i32
    %c0_i32_0 = arith.constant 0 : i32
    return %c0_i32, %arg0 : i32, i32
  }
  func.func @transform_9(%arg0: i32) -> (i32, i32, i32) {
    %c0_i32 = arith.constant 0 : i32
    %c0_i32_0 = arith.constant 0 : i32
    %c0_i32_1 = arith.constant 0 : i32
    return %arg0, %c0_i32, %c0_i32_0 : i32, i32, i32
  }
}

</mosaic_0001>

<llo_original>
// kernel: tpu_custom_call.1
$region0: #{tpu_custom_call.1}
  #allocation0 [shape = 'u32[]', space=smem, size = 0x4, offset = 0x4, fixed_abs, tag = 'smem constant byte address 0x4 - core index']
  #allocation1 [shape = 'u32[144,128]{1,0:T(1,128)}', space=vmem, size = 0x12000, scoped, tag = 'internal scratch']
  %s0 = inlined_call_operand.vmem [shape: f32[128,16], index: 0, kind: input, shape index: {}]
  %s1 = inlined_call_operand.vmem [shape: f32[128,1], index: 1, kind: input, shape index: {}]
  %s2 = inlined_call_operand.vmem [shape: f32[16,32], index: 2, kind: input, shape index: {}]
  %s3 = inlined_call_operand.vmem [shape: f32[1,32], index: 3, kind: input, shape index: {}]
  %s4 = inlined_call_operand.vmem [shape: f32[4,32], index: 4, kind: input, shape index: {}]
  %s5 = inlined_call_operand.vmem [shape: f32[4,1], index: 5, kind: input, shape index: {}]
  %s6 = inlined_call_operand.vmem [shape: s32[2,1], index: 6, kind: input, shape index: {}]
  %s7 = inlined_call_operand.vmem [shape: s32[2,1], index: 7, kind: input, shape index: {}]
  %s8 = inlined_call_operand.hbm [shape: f32[4,128], index: 8, kind: output, shape index: {0}]
  %s9 = inlined_call_operand.hbm [shape: f32[1,2,4], index: 9, kind: output, shape index: {1}]
  %10 = xla_tuple %s8, %s9
  %s11 = sld [smem:[#allocation0]]
  $region50: #{tpu_custom_call.1} parent=0
    _
  %s13 = ssub.s32 1, %s11
  %s14 = scalar_select 0, %s13, %s11
  $region1: #{tpu_custom_call.1} parent=0
    #allocation2 [shape = 'u8[2048]{0}', space=vmem, size = 0x800, scoped, tag = 'output window, operand 0, single buffered']
    #allocation3 [shape = 's32[1]{0}', space=sflag, size = 0x4, scoped, tag = 'scoped memory for tpu_custom_call.1']
    #allocation4 [shape = 'u8[1024]{0}', space=vmem, size = 0x400, scoped, tag = 'output window, operand 1, single buffered']
    #allocation5 [shape = 's32[1]{0}', space=sflag, size = 0x4, scoped, tag = 'scoped memory for tpu_custom_call.1']
    %15 = vsyncpa [#allocation3], 0
    %16 = vsyncpa [#allocation5], 0
    // Predicated region
    $region2: #{tpu_custom_call.1} parent=1 // pred_check
      _
    $region3: #{tpu_custom_call.1} parent=1 // pred_check_branch
      %18 = sbr.rel (0) target = $region5
    $region4: #{tpu_custom_call.1} parent=1 // pred_region
      _
    $region5: #{tpu_custom_call.1} parent=1 // pred_fallthru
      _
    // Predicated region
    $region6: #{tpu_custom_call.1} parent=1 // pred_check
      _
    $region7: #{tpu_custom_call.1} parent=1 // pred_check_branch
      %20 = sbr.rel (0) target = $region9
    $region8: #{tpu_custom_call.1} parent=1 // pred_region
      _
    $region9: #{tpu_custom_call.1} parent=1 // pred_fallthru
      _
    // Predicated region
    $region10: #{tpu_custom_call.1} parent=1 // pred_check
      _
    $region11: #{tpu_custom_call.1} parent=1 // pred_check_branch
      %22 = sbr.rel (0) target = $region13
    $region12: #{tpu_custom_call.1} parent=1 // pred_region
      _
    $region13: #{tpu_custom_call.1} parent=1 // pred_fallthru
      _
    // Predicated region
    $region14: #{tpu_custom_call.1} parent=1 // pred_check
      _
    $region15: #{tpu_custom_call.1} parent=1 // pred_check_branch
      %24 = sbr.rel (0) target = $region17
    $region16: #{tpu_custom_call.1} parent=1 // pred_region
      _
    $region17: #{tpu_custom_call.1} parent=1 // pred_fallthru
      _
    // Predicated region
    $region18: #{tpu_custom_call.1} parent=1 // pred_check
      _
    $region19: #{tpu_custom_call.1} parent=1 // pred_check_branch
      %26 = sbr.rel (0) target = $region21
    $region20: #{tpu_custom_call.1} parent=1 // pred_region
      _
    $region21: #{tpu_custom_call.1} parent=1 // pred_fallthru
      _
    // Predicated region
    $region22: #{tpu_custom_call.1} parent=1 // pred_check
      _
    $region23: #{tpu_custom_call.1} parent=1 // pred_check_branch
      %28 = sbr.rel (0) target = $region25
    $region24: #{tpu_custom_call.1} parent=1 // pred_region
      _
    $region25: #{tpu_custom_call.1} parent=1 // pred_fallthru
      _
    // Predicated region
    $region26: #{tpu_custom_call.1} parent=1 // pred_check
      _
    $region27: #{tpu_custom_call.1} parent=1 // pred_check_branch
      %30 = sbr.rel (0) target = $region29
    $region28: #{tpu_custom_call.1} parent=1 // pred_region
      _
    $region29: #{tpu_custom_call.1} parent=1 // pred_fallthru
      _
    // Predicated region
    $region30: #{tpu_custom_call.1} parent=1 // pred_check
      _
    $region31: #{tpu_custom_call.1} parent=1 // pred_check_branch
      %32 = sbr.rel (0) target = $region33
    $region32: #{tpu_custom_call.1} parent=1 // pred_region
      _
    $region33: #{tpu_custom_call.1} parent=1 // pred_fallthru
      _
    %v33 = vld [vmem:[%s1] sm:$0xff]
    %v34 = vld [vmem:[%s1 + $0x8] sm:$0xff]
    %v35 = vld [vmem:[%s1 + $0x10] sm:$0xff]
    %v36 = vld [vmem:[%s1 + $0x18] sm:$0xff]
    %v37 = vld [vmem:[%s1 + $0x20] sm:$0xff]
    %v38 = vld [vmem:[%s1 + $0x28] sm:$0xff]
    %v39 = vld [vmem:[%s1 + $0x30] sm:$0xff]
    %v40 = vld [vmem:[%s1 + $0x38] sm:$0xff]
    %v41 = vld [vmem:[%s1 + $0x40] sm:$0xff]
    %v42 = vld [vmem:[%s1 + $0x48] sm:$0xff]
    %v43 = vld [vmem:[%s1 + $0x50] sm:$0xff]
    %v44 = vld [vmem:[%s1 + $0x58] sm:$0xff]
    %v45 = vld [vmem:[%s1 + $0x60] sm:$0xff]
    %v46 = vld [vmem:[%s1 + $0x68] sm:$0xff]
    %v47 = vld [vmem:[%s1 + $0x70] sm:$0xff]
    %v48 = vld [vmem:[%s1 + $0x78] sm:$0xff]
    %v49 = vld [vmem:[%s0] sm:$0xff]
    %v50 = vld [vmem:[%s0 + $0x8] sm:$0xff]
    %v51 = vld [vmem:[%s0 + $0x10] sm:$0xff]
    %v52 = vld [vmem:[%s0 + $0x18] sm:$0xff]
    %v53 = vld [vmem:[%s0 + $0x20] sm:$0xff]
    %v54 = vld [vmem:[%s0 + $0x28] sm:$0xff]
    %v55 = vld [vmem:[%s0 + $0x30] sm:$0xff]
    %v56 = vld [vmem:[%s0 + $0x38] sm:$0xff]
    %v57 = vld [vmem:[%s0 + $0x40] sm:$0xff]
    %v58 = vld [vmem:[%s0 + $0x48] sm:$0xff]
    %v59 = vld [vmem:[%s0 + $0x50] sm:$0xff]
    %v60 = vld [vmem:[%s0 + $0x58] sm:$0xff]
    %v61 = vld [vmem:[%s0 + $0x60] sm:$0xff]
    %v62 = vld [vmem:[%s0 + $0x68] sm:$0xff]
    %v63 = vld [vmem:[%s0 + $0x70] sm:$0xff]
    %v64 = vld [vmem:[%s0 + $0x78] sm:$0xff]
    %66 = vset.pattern.permute.xlu0 0
    %67 = vperm.xlu0 %66, %v33
    %v68 = vpop.permute.xlu0 %67
    %71 = vset.pattern.permute.xlu0 0
    %72 = vperm.xlu0 %71, %v34
    %v73 = vpop.permute.xlu0 %72
    %76 = vset.pattern.permute.xlu0 0
    %77 = vperm.xlu0 %76, %v35
    %v78 = vpop.permute.xlu0 %77
    %81 = vset.pattern.permute.xlu0 0
    %82 = vperm.xlu0 %81, %v36
    %v83 = vpop.permute.xlu0 %82
    %86 = vset.pattern.permute.xlu0 0
    %87 = vperm.xlu0 %86, %v37
    %v88 = vpop.permute.xlu0 %87
    %91 = vset.pattern.permute.xlu0 0
    %92 = vperm.xlu0 %91, %v38
    %v93 = vpop.permute.xlu0 %92
    %96 = vset.pattern.permute.xlu0 0
    %97 = vperm.xlu0 %96, %v39
    %v98 = vpop.permute.xlu0 %97
    %101 = vset.pattern.permute.xlu0 0
    %102 = vperm.xlu0 %101, %v40
    %v103 = vpop.permute.xlu0 %102
    %106 = vset.pattern.permute.xlu0 0
    %107 = vperm.xlu0 %106, %v41
    %v108 = vpop.permute.xlu0 %107
    %111 = vset.pattern.permute.xlu0 0
    %112 = vperm.xlu0 %111, %v42
    %v113 = vpop.permute.xlu0 %112
    %116 = vset.pattern.permute.xlu0 0
    %117 = vperm.xlu0 %116, %v43
    %v118 = vpop.permute.xlu0 %117
    %121 = vset.pattern.permute.xlu0 0
    %122 = vperm.xlu0 %121, %v44
    %v123 = vpop.permute.xlu0 %122
    %126 = vset.pattern.permute.xlu0 0
    %127 = vperm.xlu0 %126, %v45
    %v128 = vpop.permute.xlu0 %127
    %131 = vset.pattern.permute.xlu0 0
    %132 = vperm.xlu0 %131, %v46
    %v133 = vpop.permute.xlu0 %132
    %136 = vset.pattern.permute.xlu0 0
    %137 = vperm.xlu0 %136, %v47
    %v138 = vpop.permute.xlu0 %137
    %141 = vset.pattern.permute.xlu0 0
    %142 = vperm.xlu0 %141, %v48
    %v143 = vpop.permute.xlu0 %142
    %v145 = vmul.f32 %v68, %v49
    %v146 = vmul.f32 %v73, %v50
    %v147 = vmul.f32 %v78, %v51
    %v148 = vmul.f32 %v83, %v52
    %v149 = vmul.f32 %v88, %v53
    %v150 = vmul.f32 %v93, %v54
    %v151 = vmul.f32 %v98, %v55
    %v152 = vmul.f32 %v103, %v56
    %v153 = vmul.f32 %v108, %v57
    %v154 = vmul.f32 %v113, %v58
    %v155 = vmul.f32 %v118, %v59
    %v156 = vmul.f32 %v123, %v60
    %v157 = vmul.f32 %v128, %v61
    %v158 = vmul.f32 %v133, %v62
    %v159 = vmul.f32 %v138, %v63
    %v160 = vmul.f32 %v143, %v64
    %v161 = vld [vmem:[%s2] sm:$0xff]
    %v162 = vld [vmem:[%s2 + $0x8] sm:$0xff]
    %v163 = vld [vmem:[%s3] sm:$0x1]
    %v165 = vlaneseq
    %v166 = vshrl.u32 %v165, 7
    %v167 = vsub.s32 0, %v166
    %v168 = vrot.slane %v163, %v167
    %vm170 = vcmask 130048
    %v172 = vsel %vm170, %v145, 0
    %v175 = vsel %vm170, %v146, 0
    %v178 = vsel %vm170, %v147, 0
    %v181 = vsel %vm170, %v148, 0
    %v184 = vsel %vm170, %v149, 0
    %v187 = vsel %vm170, %v150, 0
    %v190 = vsel %vm170, %v151, 0
    %v193 = vsel %vm170, %v152, 0
    %v196 = vsel %vm170, %v153, 0
    %v199 = vsel %vm170, %v154, 0
    %v202 = vsel %vm170, %v155, 0
    %v205 = vsel %vm170, %v156, 0
    %v208 = vsel %vm170, %v157, 0
    %v211 = vsel %vm170, %v158, 0
    %v214 = vsel %vm170, %v159, 0
    %v217 = vsel %vm170, %v160, 0
    %219 = vmatprep.subr.mxu0 0.0
    %220 = vmatpush1.msra.mxu0 %v161
    %221 = vmatprep.subr.mxu0 0.0
    %222 = vmatpush1.msra.mxu0 %v162
    %223 = vmatprep.subr.mxu0 0.0
    %224 = vmatpush1.msra.mxu0 0.0
    %225 = vmatprep.subr.mxu0 0.0
    %226 = vmatpush1.msra.mxu0 0.0
    %227 = vmatprep.subr.mxu0 0.0
    %228 = vmatpush1.msra.mxu0 0.0
    %229 = vmatprep.subr.mxu0 0.0
    %230 = vmatpush1.msra.mxu0 0.0
    %231 = vmatprep.subr.mxu0 0.0
    %232 = vmatpush1.msra.mxu0 0.0
    %233 = vmatprep.subr.mxu0 0.0
    %234 = vmatpush1.msra.mxu0 0.0
    %235 = vmatprep.subr.mxu0 0.0
    %236 = vmatpush1.msra.mxu0 0.0
    %237 = vmatprep.subr.mxu0 0.0
    %238 = vmatpush1.msra.mxu0 0.0
    %239 = vmatprep.subr.mxu0 0.0
    %240 = vmatpush1.msra.mxu0 0.0
    %241 = vmatprep.subr.mxu0 0.0
    %242 = vmatpush1.msra.mxu0 0.0
    %243 = vmatprep.subr.mxu0 0.0
    %244 = vmatpush1.msra.mxu0 0.0
    %245 = vmatprep.subr.mxu0 0.0
    %246 = vmatpush1.msra.mxu0 0.0
    %247 = vmatprep.subr.mxu0 0.0
    %248 = vmatpush1.msra.mxu0 0.0
    %249 = vmatprep.subr.mxu0 0.0
    %250 = vmatpush1.msra.mxu0 0.0
    %251 = vmatprep.subr.mxu0 0.0
    %252 = vmatpush1.msra.mxu0 0.0
    %253 = vmatprep.subr.mxu0 0.0
    %254 = vmatpush1.msra.mxu0 0.0
    %255 = vmatprep.subr.mxu0 0.0
    %256 = vmatpush1.msra.mxu0 0.0
    %257 = vmatprep.subr.mxu0 0.0
    %258 = vmatpush1.msra.mxu0 0.0
    %259 = vmatprep.subr.mxu0 0.0
    %260 = vmatpush1.msra.mxu0 0.0
    %261 = vmatprep.subr.mxu0 0.0
    %262 = vmatpush1.msra.mxu0 0.0
    %263 = vmatprep.subr.mxu0 0.0
    %264 = vmatpush1.msra.mxu0 0.0
    %265 = vmatprep.subr.mxu0 0.0
    %266 = vmatpush1.msra.mxu0 0.0
    %267 = vmatprep.subr.mxu0 0.0
    %268 = vmatpush1.msra.mxu0 0.0
    %269 = vmatprep.subr.mxu0 0.0
    %270 = vmatpush1.msra.mxu0 0.0
    %271 = vmatprep.subr.mxu0 0.0
    %272 = vmatpush1.msra.mxu0 0.0
    %273 = vmatprep.subr.mxu0 0.0
    %274 = vmatpush1.msra.mxu0 0.0
    %275 = vmatprep.subr.mxu0 0.0
    %276 = vmatpush1.msra.mxu0 0.0
    %277 = vmatprep.subr.mxu0 0.0
    %278 = vmatpush1.msra.mxu0 0.0
    %279 = vmatprep.subr.mxu0 0.0
    %280 = vmatpush1.msra.mxu0 0.0
    %281 = vmatprep.subr.mxu0 0.0
    %282 = vmatpush1.msra.mxu0 0.0
    %283 = vmatprep.mubr.f32.mxu0 0.0
    %284 = vmatmul.mubr.f32.gmra.mrb[0].mxu0 %v172
    %v285 = vpop.f32.mrb[0].mxu0
    %v286 = vadd.f32 %v168, %v285
    %v287 = vpop.f32.mrb[0].mxu0
    %288 = vmatprep.mubr.f32.mxu0 0.0
    %289 = vmatmul.mubr.f32.gmra.mrb[0].mxu0 %v175
    %v290 = vpop.f32.mrb[0].mxu0
    %v291 = vadd.f32 %v168, %v290
    %v292 = vpop.f32.mrb[0].mxu0
    %293 = vmatprep.mubr.f32.mxu0 0.0
    %294 = vmatmul.mubr.f32.gmra.mrb[0].mxu0 %v178
    %v295 = vpop.f32.mrb[0].mxu0
    %v296 = vadd.f32 %v168, %v295
    %v297 = vpop.f32.mrb[0].mxu0
    %298 = vmatprep.mubr.f32.mxu0 0.0
    %299 = vmatmul.mubr.f32.gmra.mrb[0].mxu0 %v181
    %v300 = vpop.f32.mrb[0].mxu0
    %v301 = vadd.f32 %v168, %v300
    %v302 = vpop.f32.mrb[0].mxu0
    %303 = vmatprep.mubr.f32.mxu0 0.0
    %304 = vmatmul.mubr.f32.gmra.mrb[0].mxu0 %v184
    %v305 = vpop.f32.mrb[0].mxu0
    %v306 = vadd.f32 %v168, %v305
    %v307 = vpop.f32.mrb[0].mxu0
    %308 = vmatprep.mubr.f32.mxu0 0.0
    %309 = vmatmul.mubr.f32.gmra.mrb[0].mxu0 %v187
    %v310 = vpop.f32.mrb[0].mxu0
    %v311 = vadd.f32 %v168, %v310
    %v312 = vpop.f32.mrb[0].mxu0
    %313 = vmatprep.mubr.f32.mxu0 0.0
    %314 = vmatmul.mubr.f32.gmra.mrb[0].mxu0 %v190
    %v315 = vpop.f32.mrb[0].mxu0
    %v316 = vadd.f32 %v168, %v315
    %v317 = vpop.f32.mrb[0].mxu0
    %318 = vmatprep.mubr.f32.mxu0 0.0
    %319 = vmatmul.mubr.f32.gmra.mrb[0].mxu0 %v193
    %v320 = vpop.f32.mrb[0].mxu0
    %v321 = vadd.f32 %v168, %v320
    %v322 = vpop.f32.mrb[0].mxu0
    %323 = vmatprep.mubr.f32.mxu0 0.0
    %324 = vmatmul.mubr.f32.gmra.mrb[0].mxu0 %v196
    %v325 = vpop.f32.mrb[0].mxu0
    %v326 = vadd.f32 %v168, %v325
    %v327 = vpop.f32.mrb[0].mxu0
    %328 = vmatprep.mubr.f32.mxu0 0.0
    %329 = vmatmul.mubr.f32.gmra.mrb[0].mxu0 %v199
    %v330 = vpop.f32.mrb[0].mxu0
    %v331 = vadd.f32 %v168, %v330
    %v332 = vpop.f32.mrb[0].mxu0
    %333 = vmatprep.mubr.f32.mxu0 0.0
    %334 = vmatmul.mubr.f32.gmra.mrb[0].mxu0 %v202
    %v335 = vpop.f32.mrb[0].mxu0
    %v336 = vadd.f32 %v168, %v335
    %v337 = vpop.f32.mrb[0].mxu0
    %338 = vmatprep.mubr.f32.mxu0 0.0
    %339 = vmatmul.mubr.f32.gmra.mrb[0].mxu0 %v205
    %v340 = vpop.f32.mrb[0].mxu0
    %v341 = vadd.f32 %v168, %v340
    %v342 = vpop.f32.mrb[0].mxu0
    %343 = vmatprep.mubr.f32.mxu0 0.0
    %344 = vmatmul.mubr.f32.gmra.mrb[0].mxu0 %v208
    %v345 = vpop.f32.mrb[0].mxu0
    %v346 = vadd.f32 %v168, %v345
    %v347 = vpop.f32.mrb[0].mxu0
    %348 = vmatprep.mubr.f32.mxu0 0.0
    %349 = vmatmul.mubr.f32.gmra.mrb[0].mxu0 %v211
    %v350 = vpop.f32.mrb[0].mxu0
    %v351 = vadd.f32 %v168, %v350
    %v352 = vpop.f32.mrb[0].mxu0
    %353 = vmatprep.mubr.f32.mxu0 0.0
    %354 = vmatmul.mubr.f32.gmra.mrb[0].mxu0 %v214
    %v355 = vpop.f32.mrb[0].mxu0
    %v356 = vadd.f32 %v168, %v355
    %v357 = vpop.f32.mrb[0].mxu0
    %358 = vmatprep.mubr.f32.mxu0 0.0
    %359 = vmatmul.mubr.f32.gmra.mrb[0].mxu0 %v217
    %v360 = vpop.f32.mrb[0].mxu0
    %v361 = vadd.f32 %v168, %v360
    %v362 = vpop.f32.mrb[0].mxu0
    %363 = vdwg.mxu0
    %v364 = vmax.f32 %v286, 0.0
    %v365 = vmax.f32 %v291, 0.0
    %v366 = vmax.f32 %v296, 0.0
    %v367 = vmax.f32 %v301, 0.0
    %v368 = vmax.f32 %v306, 0.0
    %v369 = vmax.f32 %v311, 0.0
    %v370 = vmax.f32 %v316, 0.0
    %v371 = vmax.f32 %v321, 0.0
    %v372 = vmax.f32 %v326, 0.0
    %v373 = vmax.f32 %v331, 0.0
    %v374 = vmax.f32 %v336, 0.0
    %v375 = vmax.f32 %v341, 0.0
    %v376 = vmax.f32 %v346, 0.0
    %v377 = vmax.f32 %v351, 0.0
    %v378 = vmax.f32 %v356, 0.0
    %v379 = vmax.f32 %v361, 0.0
    %v380 = vld [vmem:[%s4] sm:$0xf]
    %v381 = vld [vmem:[%s5] sm:$0xf]
    %383 = vset.pattern.permute.xlu0 0
    %384 = vperm.xlu0 %383, %v381
    %v385 = vpop.permute.xlu0 %384
    %vm387 = vcmask 261120
    %v389 = vsel %vm387, %v380, 0
    %v392 = vsel %vm387, %v364, 0
    %v395 = vsel %vm387, %v365, 0
    %v398 = vsel %vm387, %v366, 0
    %v401 = vsel %vm387, %v367, 0
    %v404 = vsel %vm387, %v368, 0
    %v407 = vsel %vm387, %v369, 0
    %v410 = vsel %vm387, %v370, 0
    %v413 = vsel %vm387, %v371, 0
    %v416 = vsel %vm387, %v372, 0
    %v419 = vsel %vm387, %v373, 0
    %v422 = vsel %vm387, %v374, 0
    %v425 = vsel %vm387, %v375, 0
    %v428 = vsel %vm387, %v376, 0
    %v431 = vsel %vm387, %v377, 0
    %v434 = vsel %vm387, %v378, 0
    %v437 = vsel %vm387, %v379, 0
    %439 = vmatprep.subr.mxu0 0.0
    %440 = vmatpush1.xpose.msra.mxu0 %v392
    %441 = vmatprep.subr.mxu0 0.0
    %442 = vmatpush1.xpose.msra.mxu0 %v395
    %443 = vmatprep.subr.mxu0 0.0
    %444 = vmatpush1.xpose.msra.mxu0 %v398
    %445 = vmatprep.subr.mxu0 0.0
    %446 = vmatpush1.xpose.msra.mxu0 %v401
    %447 = vmatprep.subr.mxu0 0.0
    %448 = vmatpush1.xpose.msra.mxu0 %v404
    %449 = vmatprep.subr.mxu0 0.0
    %450 = vmatpush1.xpose.msra.mxu0 %v407
    %451 = vmatprep.subr.mxu0 0.0
    %452 = vmatpush1.xpose.msra.mxu0 %v410
    %453 = vmatprep.subr.mxu0 0.0
    %454 = vmatpush1.xpose.msra.mxu0 %v413
    %455 = vmatprep.subr.mxu0 0.0
    %456 = vmatpush1.xpose.msra.mxu0 %v416
    %457 = vmatprep.subr.mxu0 0.0
    %458 = vmatpush1.xpose.msra.mxu0 %v419
    %459 = vmatprep.subr.mxu0 0.0
    %460 = vmatpush1.xpose.msra.mxu0 %v422
    %461 = vmatprep.subr.mxu0 0.0
    %462 = vmatpush1.xpose.msra.mxu0 %v425
    %463 = vmatprep.subr.mxu0 0.0
    %464 = vmatpush1.xpose.msra.mxu0 %v428
    %465 = vmatprep.subr.mxu0 0.0
    %466 = vmatpush1.xpose.msra.mxu0 %v431
    %467 = vmatprep.subr.mxu0 0.0
    %468 = vmatpush1.xpose.msra.mxu0 %v434
    %469 = vmatprep.subr.mxu0 0.0
    %470 = vmatpush1.xpose.msra.mxu0 %v437
    %471 = vmatprep.subr.mxu0 0.0
    %472 = vmatpush1.xpose.msra.mxu0 0.0
    %473 = vmatprep.subr.mxu0 0.0
    %474 = vmatpush1.xpose.msra.mxu0 0.0
    %475 = vmatprep.subr.mxu0 0.0
    %476 = vmatpush1.xpose.msra.mxu0 0.0
    %477 = vmatprep.subr.mxu0 0.0
    %478 = vmatpush1.xpose.msra.mxu0 0.0
    %479 = vmatprep.subr.mxu0 0.0
    %480 = vmatpush1.xpose.msra.mxu0 0.0
    %481 = vmatprep.subr.mxu0 0.0
    %482 = vmatpush1.xpose.msra.mxu0 0.0
    %483 = vmatprep.subr.mxu0 0.0
    %484 = vmatpush1.xpose.msra.mxu0 0.0
    %485 = vmatprep.subr.mxu0 0.0
    %486 = vmatpush1.xpose.msra.mxu0 0.0
    %487 = vmatprep.subr.mxu0 0.0
    %488 = vmatpush1.xpose.msra.mxu0 0.0
    %489 = vmatprep.subr.mxu0 0.0
    %490 = vmatpush1.xpose.msra.mxu0 0.0
    %491 = vmatprep.subr.mxu0 0.0
    %492 = vmatpush1.xpose.msra.mxu0 0.0
    %493 = vmatprep.subr.mxu0 0.0
    %494 = vmatpush1.xpose.msra.mxu0 0.0
    %495 = vmatprep.subr.mxu0 0.0
    %496 = vmatpush1.xpose.msra.mxu0 0.0
    %497 = vmatprep.subr.mxu0 0.0
    %498 = vmatpush1.xpose.msra.mxu0 0.0
    %499 = vmatprep.subr.mxu0 0.0
    %500 = vmatpush1.xpose.msra.mxu0 0.0
    %501 = vmatprep.subr.mxu0 0.0
    %502 = vmatpush1.xpose.msra.mxu0 0.0
    %503 = vmatprep.mubr.f32.mxu0 0.0
    %504 = vmatmul.mubr.f32.gmra.mrb[0].mxu0 %v389
    %v505 = vpop.f32.mrb[0].mxu0
    %v506 = vadd.f32 %v385, %v505
    %v507 = vpop.f32.mrb[0].mxu0
    %508 = vdwg.mxu0
    %509 = vst [vmem:[#allocation2] sm:$0xf] %v506
    %s510 = smul.u32 0, 128
    %v511 = vlaneseq
    %v512 = vand.u32 %v511, 127
    %v513 = vstv %s510
    %v514 = vadd.s32 %v513, %v512
    %v515 = vld [vmem:[%s6] sm:$0x3]
    %516 = vset.pattern.permute.xlu0 0
    %517 = vperm.xlu0 %516, %v515
    %v518 = vpop.permute.xlu0 %517
    %vm519 = vcmp.ge.s32.totalorder %v514, %v518
    %v520 = vld [vmem:[%s7] sm:$0x3]
    %521 = vset.pattern.permute.xlu0 0
    %522 = vperm.xlu0 %521, %v520
    %v523 = vpop.permute.xlu0 %522
    %vm524 = vcmp.lt.s32.totalorder %v514, %v523
    %vm525 = vmand %vm519, %vm524
    %v526 = vsel %vm525, 1, 0
    %v527 = vcvt.s32.f32 %v526
    %528 = vmatprep.subr.mxu0 0.0
    %529 = vmatpush1.xpose.msra.mxu0 %v506
    %530 = vmatprep.subr.mxu0 0.0
    %531 = vmatpush1.xpose.msra.mxu0 0.0
    %532 = vmatprep.subr.mxu0 0.0
    %533 = vmatpush1.xpose.msra.mxu0 0.0
    %534 = vmatprep.subr.mxu0 0.0
    %535 = vmatpush1.xpose.msra.mxu0 0.0
    %536 = vmatprep.subr.mxu0 0.0
    %537 = vmatpush1.xpose.msra.mxu0 0.0
    %538 = vmatprep.subr.mxu0 0.0
    %539 = vmatpush1.xpose.msra.mxu0 0.0
    %540 = vmatprep.subr.mxu0 0.0
    %541 = vmatpush1.xpose.msra.mxu0 0.0
    %542 = vmatprep.subr.mxu0 0.0
    %543 = vmatpush1.xpose.msra.mxu0 0.0
    %544 = vmatprep.subr.mxu0 0.0
    %545 = vmatpush1.xpose.msra.mxu0 0.0
    %546 = vmatprep.subr.mxu0 0.0
    %547 = vmatpush1.xpose.msra.mxu0 0.0
    %548 = vmatprep.subr.mxu0 0.0
    %549 = vmatpush1.xpose.msra.mxu0 0.0
    %550 = vmatprep.subr.mxu0 0.0
    %551 = vmatpush1.xpose.msra.mxu0 0.0
    %552 = vmatprep.subr.mxu0 0.0
    %553 = vmatpush1.xpose.msra.mxu0 0.0
    %554 = vmatprep.subr.mxu0 0.0
    %555 = vmatpush1.xpose.msra.mxu0 0.0
    %556 = vmatprep.subr.mxu0 0.0
    %557 = vmatpush1.xpose.msra.mxu0 0.0
    %558 = vmatprep.subr.mxu0 0.0
    %559 = vmatpush1.xpose.msra.mxu0 0.0
    %560 = vmatprep.subr.mxu0 0.0
    %561 = vmatpush1.xpose.msra.mxu0 0.0
    %562 = vmatprep.subr.mxu0 0.0
    %563 = vmatpush1.xpose.msra.mxu0 0.0
    %564 = vmatprep.subr.mxu0 0.0
    %565 = vmatpush1.xpose.msra.mxu0 0.0
    %566 = vmatprep.subr.mxu0 0.0
    %567 = vmatpush1.xpose.msra.mxu0 0.0
    %568 = vmatprep.subr.mxu0 0.0
    %569 = vmatpush1.xpose.msra.mxu0 0.0
    %570 = vmatprep.subr.mxu0 0.0
    %571 = vmatpush1.xpose.msra.mxu0 0.0
    %572 = vmatprep.subr.mxu0 0.0
    %573 = vmatpush1.xpose.msra.mxu0 0.0
    %574 = vmatprep.subr.mxu0 0.0
    %575 = vmatpush1.xpose.msra.mxu0 0.0
    %576 = vmatprep.subr.mxu0 0.0
    %577 = vmatpush1.xpose.msra.mxu0 0.0
    %578 = vmatprep.subr.mxu0 0.0
    %579 = vmatpush1.xpose.msra.mxu0 0.0
    %580 = vmatprep.subr.mxu0 0.0
    %581 = vmatpush1.xpose.msra.mxu0 0.0
    %582 = vmatprep.subr.mxu0 0.0
    %583 = vmatpush1.xpose.msra.mxu0 0.0
    %584 = vmatprep.subr.mxu0 0.0
    %585 = vmatpush1.xpose.msra.mxu0 0.0
    %586 = vmatprep.subr.mxu0 0.0
    %587 = vmatpush1.xpose.msra.mxu0 0.0
    %588 = vmatprep.subr.mxu0 0.0
    %589 = vmatpush1.xpose.msra.mxu0 0.0
    %590 = vmatprep.subr.mxu0 0.0
    %591 = vmatpush1.xpose.msra.mxu0 0.0
    %592 = vmatprep.mubr.f32.mxu0 0.0
    %593 = vmatmul.mubr.f32.gmra.mrb[0].mxu0 %v527
    %v594 = vpop.f32.mrb[0].mxu0
    %v595 = vadd.f32 0.0, %v594
    %v596 = vpop.f32.mrb[0].mxu0
    %597 = vdwg.mxu0
    %vm598 = vcmask 25600
    %599 = vst.msk [vmem:[#allocation4] sm:$0x3] %vm598, %v595
    // Predicated region
    $region34: #{tpu_custom_call.1} parent=1 // pred_check
      _
    $region35: #{tpu_custom_call.1} parent=1 // pred_check_branch
      %601 = sbr.rel (0) target = $region37
    $region36: #{tpu_custom_call.1} parent=1 // pred_region
      %s603 = ssub.s32 64, 64
      %604 = vsyncadd [#allocation3], %s603
      %s606 = sshll.u32 [#allocation2], 4
      %s607 = int_to_ptr.vmem [resolvable:$true] %s606
      %609 = dma.vmem_to_hbm [thread:$0]  %s607, 64, %s8, [#allocation3]
    $region37: #{tpu_custom_call.1} parent=1 // pred_fallthru
      _
    // Predicated region
    $region38: #{tpu_custom_call.1} parent=1 // pred_check
      _
    $region39: #{tpu_custom_call.1} parent=1 // pred_check_branch
      %611 = sbr.rel (0) target = $region41
    $region40: #{tpu_custom_call.1} parent=1 // pred_region
      %s613 = ssub.s32 32, 32
      %614 = vsyncadd [#allocation5], %s613
      %s616 = sshll.u32 [#allocation4], 4
      %s617 = int_to_ptr.vmem [resolvable:$true] %s616
      %619 = dma.vmem_to_hbm [thread:$0]  %s617, 32, %s9, [#allocation5]
    $region41: #{tpu_custom_call.1} parent=1 // pred_fallthru
      _
    // Predicated region
    $region42: #{tpu_custom_call.1} parent=1 // pred_check
      _
    $region43: #{tpu_custom_call.1} parent=1 // pred_check_branch
      %621 = sbr.rel (0) target = $region45
    $region44: #{tpu_custom_call.1} parent=1 // pred_region
      %622 = dma.done [#allocation3], 64
    $region45: #{tpu_custom_call.1} parent=1 // pred_fallthru
      _
    // Predicated region
    $region46: #{tpu_custom_call.1} parent=1 // pred_check
      _
    $region47: #{tpu_custom_call.1} parent=1 // pred_check_branch
      %624 = sbr.rel (0) target = $region49
    $region48: #{tpu_custom_call.1} parent=1 // pred_region
      %625 = dma.done [#allocation5], 32
    $region49: #{tpu_custom_call.1} parent=1 // pred_fallthru
      _
    %626 = vsyncpa [#allocation3], 1
    %627 = vsyncpa [#allocation5], 1

</llo_original>
